<compile_context>
chip_gen: v5e
topology: v5e:2x2
jax: 0.10.0
libtpu: 0.0.40
codegen_flags: <defaults>
</compile_context>

<pallas_src>
import math

import jax
import jax.numpy as jnp
from jax.experimental import pallas as pl
from jax.experimental.pallas import tpu as pltpu

# ------------------------- small synthetic configuration -------------------------
B = 2            # batch
N = 16           # tokens (sequence length)
DIM = 256        # channel dim -> 2 x 128 lanes (lane-dense)
INIT_VALUES = 1e-5
ROW_TILE_CAP = 512   # rows per grid step when the input outgrows a single tile


# --------------------------------- kernel body ---------------------------------
def _layer_scale_kernel(x_ref, gamma_ref, out_ref):
    # x_ref: (tile_rows, C), gamma_ref: (1, C) -> broadcast over the sublane axis.
    # Single full-width (lane-dense) store; pure VPU multiply.
    out_ref[...] = x_ref[...] * gamma_ref[...]


# --------------------------------- pallas wrapper ---------------------------------
def layer_scale_forward(x, gamma):
    """LayerScale forward: x * gamma broadcast along the last dim."""
    orig_shape = x.shape
    c = orig_shape[-1]
    rows = math.prod(orig_shape[:-1])
    xf = x.reshape(rows, c)
    g = gamma.reshape(1, c).astype(x.dtype)

    # One grid step at toy sizes; row-tiled (parallel) grid only when rows > ROW_TILE_CAP.
    if rows <= ROW_TILE_CAP:
        tile = rows
    else:
        tile = ROW_TILE_CAP
        assert rows % tile == 0, "row padding for ragged tiles not needed at these sizes"
    grid = (rows // tile,)

    out = pl.pallas_call(
        _layer_scale_kernel,
        out_shape=jax.ShapeDtypeStruct((rows, c), x.dtype),
        grid=grid,
        in_specs=[
            pl.BlockSpec((tile, c), lambda i: (i, 0)),   # x row tile
            pl.BlockSpec((1, c), lambda i: (0, 0)),      # gamma, resident across all steps
        ],
        out_specs=pl.BlockSpec((tile, c), lambda i: (i, 0)),
        # Rows are independent -> parallel axis (free at grid=(1,), shards across the two
        # TensorCores on v7x once the grid actually has multiple steps).
        compiler_params=pltpu.CompilerParams(dimension_semantics=("parallel",)),
    )(xf, g)
    return out.reshape(orig_shape)


# --------------------------------------- main ---------------------------------------
if __name__ == "__main__":
    root = jax.random.PRNGKey(0)
    kx, kg = jax.random.split(root, 2)

    x = jax.random.normal(kx, (B, N, DIM), jnp.float32)
    # Module init is gamma = init_values * ones(dim); perturb per-channel so the
    # lane-broadcast is actually exercised (mimics a trained parameter).
    gamma = INIT_VALUES * (1.0 + 0.5 * jax.random.normal(kg, (DIM,), jnp.float32))

    out = layer_scale_forward(x, gamma)
    out = jax.block_until_ready(out)

    # pure-JAX reference of the module forward
    ref = x * gamma
    assert out.shape == (B, N, DIM)
    assert jnp.allclose(out, ref, atol=1e-6, rtol=1e-6)

    print("KERNEL_OK")
</pallas_src>

<mosaic_0001>
module attributes {stable_mosaic.version = 11 : i64} {
  func.func @_layer_scale_kernel(%arg0: i32, %arg1: memref<32x256xf32, #tpu.memory_space<vmem>>, %arg2: memref<1x256xf32, #tpu.memory_space<vmem>>, %arg3: memref<32x256xf32, #tpu.memory_space<vmem>>) attributes {dimension_semantics = [#tpu.dimension_semantics<parallel>], iteration_bounds = array<i64: 1>, scalar_prefetch = 0 : i64, scratch_operands = 0 : i64, tpu.core_type = #tpu.core_type<tc>, window_params = [{transform_indices = @transform_0, window_bounds = array<i64: 32, 256>}, {pipeline_mode = #tpu.pipeline_mode<synchronous>, transform_indices = @transform_1, window_bounds = array<i64: 1, 256>}, {transform_indices = @transform_2, window_bounds = array<i64: 32, 256>}]} {
    %c0 = arith.constant 0 : index
    %c0_0 = arith.constant 0 : index
    %0 = vector.load %arg1[%c0, %c0_0] : memref<32x256xf32, #tpu.memory_space<vmem>>, vector<32x256xf32>
    %c0_1 = arith.constant 0 : index
    %c0_2 = arith.constant 0 : index
    %1 = vector.load %arg2[%c0_1, %c0_2] : memref<1x256xf32, #tpu.memory_space<vmem>>, vector<1x256xf32>
    %2 = vector.broadcast %1 : vector<1x256xf32> to vector<32x256xf32>
    %3 = arith.mulf %0, %2 : vector<32x256xf32>
    %c0_3 = arith.constant 0 : index
    %c0_4 = arith.constant 0 : index
    %4 = vector.load %arg3[%c0_3, %c0_4] : memref<32x256xf32, #tpu.memory_space<vmem>>, vector<32x256xf32>
    tpu.vector_store %arg3[%c0_3, %c0_4], %3 {strides = array<i32>} : memref<32x256xf32, #tpu.memory_space<vmem>>, vector<32x256xf32>,
    return
  }
  func.func @transform_0(%arg0: i32) -> (i32, i32) {
    %c0_i32 = arith.constant 0 : i32
    %c0_i32_0 = arith.constant 0 : i32
    return %arg0, %c0_i32 : i32, i32
  }
  func.func @transform_1(%arg0: i32) -> (i32, i32) {
    %c0_i32 = arith.constant 0 : i32
    %c0_i32_0 = arith.constant 0 : i32
    %c0_i32_1 = arith.constant 0 : i32
    return %c0_i32, %c0_i32_0 : i32, i32
  }
  func.func @transform_2(%arg0: i32) -> (i32, i32) {
    %c0_i32 = arith.constant 0 : i32
    %c0_i32_0 = arith.constant 0 : i32
    return %arg0, %c0_i32 : i32, i32
  }
}

</mosaic_0001>

<llo_original>
// kernel: tpu_custom_call.1
$region0: #{tpu_custom_call.1}
  #allocation0 [shape = 'u32[]', space=smem, size = 0x4, offset = 0x4, fixed_abs, tag = 'smem constant byte address 0x4 - core index']
  #allocation1 [shape = 'u32[72,128]{1,0:T(1,128)}', space=vmem, size = 0x9000, scoped, tag = 'internal scratch']
  %s0 = inlined_call_operand.hbm [shape: f32[32,256], index: 0, kind: input, shape index: {}]
  %s1 = inlined_call_operand.hbm [shape: f32[1,256], index: 1, kind: input, shape index: {}]
  %s2 = inlined_call_operand.hbm [shape: f32[32,256], index: 2, kind: output, shape index: {}]
  %s3 = sld [smem:[#allocation0]]
  $region26: #{tpu_custom_call.1} parent=0
    _
  %s5 = ssub.s32 1, %s3
  %s6 = scalar_select 0, %s5, %s3
  $region1: #{tpu_custom_call.1} parent=0
    #allocation2 [shape = 'u8[32768]{0}', space=vmem, size = 0x8000, scoped, tag = 'input window, operand 0, single buffered']
    #allocation3 [shape = 's32[1]{0}', space=sflag, size = 0x4, scoped, tag = 'scoped memory for tpu_custom_call.1']
    #allocation4 [shape = 's32[1]{0}', space=sflag, size = 0x4, scoped, tag = 'scoped memory for tpu_custom_call.1']
    #allocation5 [shape = 'u8[1024]{0}', space=vmem, size = 0x400, scoped, tag = 'input window, operand 1, single buffered']
    #allocation6 [shape = 's32[1]{0}', space=sflag, size = 0x4, scoped, tag = 'scoped memory for tpu_custom_call.1']
    #allocation7 [shape = 'u8[32768]{0}', space=vmem, size = 0x8000, scoped, tag = 'output window, operand 0, single buffered']
    %7 = vsyncpa [#allocation3], 0
    %8 = vsyncpa [#allocation6], 0
    %9 = vsyncpa [#allocation4], 0
    // Predicated region
    $region2: #{tpu_custom_call.1} parent=1 // pred_check
      _
    $region3: #{tpu_custom_call.1} parent=1 // pred_check_branch
      %11 = sbr.rel (0) target = $region5
    $region4: #{tpu_custom_call.1} parent=1 // pred_region
      %13 = vsyncadd [#allocation3], 0
      %s14 = sshll.u32 %s0, 4
      %s15 = int_to_ptr.hbm [resolvable:$true] %s14
      %s16 = sshll.u32 [#allocation2], 4
      %s17 = int_to_ptr.vmem [resolvable:$true] %s16
      %22 = dma.hbm_to_vmem [thread:$0]  %s15, 1024, %s17, [#allocation3], 256, 256, 16
    $region5: #{tpu_custom_call.1} parent=1 // pred_fallthru
      _
    // Predicated region
    $region6: #{tpu_custom_call.1} parent=1 // pred_check
      _
    $region7: #{tpu_custom_call.1} parent=1 // pred_check_branch
      %24 = sbr.rel (0) target = $region9
    $region8: #{tpu_custom_call.1} parent=1 // pred_region
      %26 = vsyncadd [#allocation6], 0
      %s28 = sshll.u32 %s1, 4
      %s29 = int_to_ptr.hbm [resolvable:$true] %s28
      %s30 = sshll.u32 [#allocation5], 4
      %s31 = int_to_ptr.vmem [resolvable:$true] %s30
      %33 = dma.hbm_to_vmem [thread:$0]  %s29, 32, %s31, [#allocation6]
    $region9: #{tpu_custom_call.1} parent=1 // pred_fallthru
      _
    // Predicated region
    $region10: #{tpu_custom_call.1} parent=1 // pred_check
      _
    $region11: #{tpu_custom_call.1} parent=1 // pred_check_branch
      %35 = sbr.rel (0) target = $region13
    $region12: #{tpu_custom_call.1} parent=1 // pred_region
      %37 = dma.done [#allocation3], 1024
    $region13: #{tpu_custom_call.1} parent=1 // pred_fallthru
      _
    // Predicated region
    $region14: #{tpu_custom_call.1} parent=1 // pred_check
      _
    $region15: #{tpu_custom_call.1} parent=1 // pred_check_branch
      %39 = sbr.rel (0) target = $region17
    $region16: #{tpu_custom_call.1} parent=1 // pred_region
      %41 = dma.done [#allocation6], 32
    $region17: #{tpu_custom_call.1} parent=1 // pred_fallthru
      _
    %v42 = vld [vmem:[#allocation2] sm:$0xff]
    %v43 = vld [vmem:[#allocation2 + $0x8] sm:$0xff]
    %v44 = vld [vmem:[#allocation2 + $0x10] sm:$0xff]
    %v45 = vld [vmem:[#allocation2 + $0x18] sm:$0xff]
    %v46 = vld [vmem:[#allocation2 + $0x20] sm:$0xff]
    %v47 = vld [vmem:[#allocation2 + $0x28] sm:$0xff]
    %v48 = vld [vmem:[#allocation2 + $0x30] sm:$0xff]
    %v49 = vld [vmem:[#allocation2 + $0x38] sm:$0xff]
    %v50 = vld [vmem:[#allocation5] sm:$0x3]
    %v52 = vperm.slane %v50, 0
    %v53 = vperm.slane %v50, 1
    %v56 = vmul.f32 %v42, %v52
    %v57 = vmul.f32 %v43, %v53
    %v58 = vmul.f32 %v44, %v52
    %v59 = vmul.f32 %v45, %v53
    %v60 = vmul.f32 %v46, %v52
    %v61 = vmul.f32 %v47, %v53
    %v62 = vmul.f32 %v48, %v52
    %v63 = vmul.f32 %v49, %v53
    %64 = vst [vmem:[#allocation7] sm:$0xff] %v56
    %65 = vst [vmem:[#allocation7 + $0x8] sm:$0xff] %v57
    %66 = vst [vmem:[#allocation7 + $0x10] sm:$0xff] %v58
    %67 = vst [vmem:[#allocation7 + $0x18] sm:$0xff] %v59
    %68 = vst [vmem:[#allocation7 + $0x20] sm:$0xff] %v60
    %69 = vst [vmem:[#allocation7 + $0x28] sm:$0xff] %v61
    %70 = vst [vmem:[#allocation7 + $0x30] sm:$0xff] %v62
    %71 = vst [vmem:[#allocation7 + $0x38] sm:$0xff] %v63
    // Predicated region
    $region18: #{tpu_custom_call.1} parent=1 // pred_check
      _
    $region19: #{tpu_custom_call.1} parent=1 // pred_check_branch
      %73 = sbr.rel (0) target = $region21
    $region20: #{tpu_custom_call.1} parent=1 // pred_region
      %75 = vsyncadd [#allocation4], 0
      %s76 = sshll.u32 [#allocation7], 4
      %s77 = int_to_ptr.vmem [resolvable:$true] %s76
      %s78 = sshll.u32 %s2, 4
      %s79 = int_to_ptr.hbm [resolvable:$true] %s78
      %84 = dma.vmem_to_hbm [thread:$0]  %s77, 1024, %s79, [#allocation4], 256, 256, 16
    $region21: #{tpu_custom_call.1} parent=1 // pred_fallthru
      _
    // Predicated region
    $region22: #{tpu_custom_call.1} parent=1 // pred_check
      _
    $region23: #{tpu_custom_call.1} parent=1 // pred_check_branch
      %86 = sbr.rel (0) target = $region25
    $region24: #{tpu_custom_call.1} parent=1 // pred_region
      %88 = dma.done [#allocation4], 1024
    $region25: #{tpu_custom_call.1} parent=1 // pred_fallthru
      _
    %89 = vsyncpa [#allocation3], 1
    %90 = vsyncpa [#allocation6], 1
    %91 = vsyncpa [#allocation4], 1

</llo_original>
